<compile_context>
chip_gen: v5e
topology: v5e:2x2
jax: 0.10.0
libtpu: 0.0.40
codegen_flags: <defaults>
</compile_context>

<pallas_src>
import numpy as np

import jax
import jax.numpy as jnp
from jax.experimental import pallas as pl
from jax.experimental.pallas import tpu as pltpu


# ------------------------------ Pallas kernel ------------------------------
def pcd_scaler_kernel(x_ref, inv_ref, o_ref):
    # x_ref:   (TR, 128*C) block of flattened points (lane-dense)
    # inv_ref: (1,  128*C) repeated per-channel reciprocal pattern
    o_ref[...] = x_ref[...] * inv_ref[...]


# ------------------------------ wrapper -------------------------------------
_LANE_POINTS = 128      # points packed per row -> lane width = 128 * C
_MAX_ROWS = 1024        # up to 1024 x 384 x 4B = 1.5 MiB fp32 per block


def pcd_scaler_per_channel(pcd, scaling_factor):
    """pcd: (..., C) array.  Returns pcd / scaling_factor (broadcast on last dim)."""
    orig_shape = pcd.shape
    orig_dtype = pcd.dtype
    C = orig_shape[-1]
    P = int(np.prod(orig_shape[:-1]))          # number of points
    W = _LANE_POINTS * C                        # lane width, multiple of 128

    # Reciprocal computed once on host in float64, then cast (<=1 ulp vs divide).
    inv = (1.0 / np.asarray(scaling_factor, dtype=np.float64)).astype(orig_dtype)
    pattern = jnp.asarray(np.tile(inv, _LANE_POINTS)).reshape(1, W)

    # Row-major view: (P, C) -> pad P to a multiple of 128 points -> (R, 128*C).
    flat = pcd.reshape(P, C)
    P_pad = ((P + _LANE_POINTS - 1) // _LANE_POINTS) * _LANE_POINTS
    if P_pad != P:
        flat = jnp.pad(flat, ((0, P_pad - P), (0, 0)))
    R = P_pad // _LANE_POINTS
    x2d = flat.reshape(R, W)

    if R <= _MAX_ROWS:
        TR = R                                  # full-dim block (always legal)
        grid = (1,)
    else:
        TR = _MAX_ROWS                          # multiple of 8 sublanes
        grid = (pl.cdiv(R, TR),)                # ragged last block handled by Pallas

    out2d = pl.pallas_call(
        pcd_scaler_kernel,
        out_shape=jax.ShapeDtypeStruct((R, W), orig_dtype),
        grid=grid,
        in_specs=[
            pl.BlockSpec((TR, W), lambda i: (i, 0)),   # pcd rows
            pl.BlockSpec((1, W), lambda i: (0, 0)),    # reciprocal pattern (resident)
        ],
        out_specs=pl.BlockSpec((TR, W), lambda i: (i, 0)),
        compiler_params=pltpu.CompilerParams(dimension_semantics=("parallel",)),
    )(x2d, pattern)

    out = out2d.reshape(P_pad, C)[:P].reshape(orig_shape)
    return out


# ----------------------------------- main -----------------------------------
if __name__ == "__main__":
    key = jax.random.PRNGKey(0)
    scaling_factor = np.array([0.14593576, 0.15753542, 0.18873914])

    # Shape 1: point count divisible by 128 (no padding path).
    B, N, C = 2, 1024, 3
    pcd = jax.random.normal(key, (B, N, C), dtype=jnp.float32)
    out = pcd_scaler_per_channel(pcd, scaling_factor)
    jax.block_until_ready(out)

    ref = pcd / jnp.asarray(scaling_factor, dtype=jnp.float32)
    assert out.shape == pcd.shape and out.dtype == pcd.dtype, (out.shape, out.dtype)
    assert bool(jnp.all(jnp.isfinite(out)))
    assert bool(jnp.allclose(out, ref, rtol=1e-5, atol=1e-6)), \
        float(jnp.max(jnp.abs(out - ref)))

    # Shape 2: ragged point count (exercises the pad/slice path).
    key2 = jax.random.PRNGKey(0)
    pcd2 = jax.random.normal(key2, (2, 7, 50, 3), dtype=jnp.float32)
    out2 = pcd_scaler_per_channel(pcd2, scaling_factor)
    jax.block_until_ready(out2)
    ref2 = pcd2 / jnp.asarray(scaling_factor, dtype=jnp.float32)
    assert out2.shape == pcd2.shape
    assert bool(jnp.allclose(out2, ref2, rtol=1e-5, atol=1e-6))

    print("KERNEL_OK")
</pallas_src>

<mosaic_0001>
module attributes {stable_mosaic.version = 11 : i64} {
  func.func @pcd_scaler_kernel(%arg0: i32, %arg1: memref<16x384xf32, #tpu.memory_space<vmem>>, %arg2: memref<1x384xf32, #tpu.memory_space<vmem>>, %arg3: memref<16x384xf32, #tpu.memory_space<vmem>>) attributes {dimension_semantics = [#tpu.dimension_semantics<parallel>], iteration_bounds = array<i64: 1>, scalar_prefetch = 0 : i64, scratch_operands = 0 : i64, tpu.core_type = #tpu.core_type<tc>, window_params = [{transform_indices = @transform_0, window_bounds = array<i64: 16, 384>}, {pipeline_mode = #tpu.pipeline_mode<synchronous>, transform_indices = @transform_1, window_bounds = array<i64: 1, 384>}, {transform_indices = @transform_2, window_bounds = array<i64: 16, 384>}]} {
    %c0 = arith.constant 0 : index
    %c0_0 = arith.constant 0 : index
    %0 = vector.load %arg1[%c0, %c0_0] : memref<16x384xf32, #tpu.memory_space<vmem>>, vector<16x384xf32>
    %c0_1 = arith.constant 0 : index
    %c0_2 = arith.constant 0 : index
    %1 = vector.load %arg2[%c0_1, %c0_2] : memref<1x384xf32, #tpu.memory_space<vmem>>, vector<1x384xf32>
    %2 = vector.broadcast %1 : vector<1x384xf32> to vector<16x384xf32>
    %3 = arith.mulf %0, %2 : vector<16x384xf32>
    %c0_3 = arith.constant 0 : index
    %c0_4 = arith.constant 0 : index
    %4 = vector.load %arg3[%c0_3, %c0_4] : memref<16x384xf32, #tpu.memory_space<vmem>>, vector<16x384xf32>
    tpu.vector_store %arg3[%c0_3, %c0_4], %3 {strides = array<i32>} : memref<16x384xf32, #tpu.memory_space<vmem>>, vector<16x384xf32>,
    return
  }
  func.func @transform_0(%arg0: i32) -> (i32, i32) {
    %c0_i32 = arith.constant 0 : i32
    %c0_i32_0 = arith.constant 0 : i32
    return %arg0, %c0_i32 : i32, i32
  }
  func.func @transform_1(%arg0: i32) -> (i32, i32) {
    %c0_i32 = arith.constant 0 : i32
    %c0_i32_0 = arith.constant 0 : i32
    %c0_i32_1 = arith.constant 0 : i32
    return %c0_i32, %c0_i32_0 : i32, i32
  }
  func.func @transform_2(%arg0: i32) -> (i32, i32) {
    %c0_i32 = arith.constant 0 : i32
    %c0_i32_0 = arith.constant 0 : i32
    return %arg0, %c0_i32 : i32, i32
  }
}

</mosaic_0001>

<llo_original>
// kernel: tpu_custom_call.1
$region0: #{tpu_custom_call.1}
  #allocation0 [shape = 'u32[]', space=smem, size = 0x4, offset = 0x4, fixed_abs, tag = 'smem constant byte address 0x4 - core index']
  #allocation1 [shape = 'u32[72,128]{1,0:T(1,128)}', space=vmem, size = 0x9000, scoped, tag = 'internal scratch']
  %s0 = inlined_call_operand.hbm [shape: f32[16,384], index: 0, kind: input, shape index: {}]
  %s1 = inlined_call_operand.hbm [shape: f32[1,384], index: 1, kind: input, shape index: {}]
  %s2 = inlined_call_operand.hbm [shape: f32[16,384], index: 2, kind: output, shape index: {}]
  %s3 = sld [smem:[#allocation0]]
  $region26: #{tpu_custom_call.1} parent=0
    _
  %s5 = ssub.s32 1, %s3
  %s6 = scalar_select 0, %s5, %s3
  $region1: #{tpu_custom_call.1} parent=0
    #allocation2 [shape = 'u8[24576]{0}', space=vmem, size = 0x6000, scoped, tag = 'input window, operand 0, single buffered']
    #allocation3 [shape = 's32[1]{0}', space=sflag, size = 0x4, scoped, tag = 'scoped memory for tpu_custom_call.1']
    #allocation4 [shape = 's32[1]{0}', space=sflag, size = 0x4, scoped, tag = 'scoped memory for tpu_custom_call.1']
    #allocation5 [shape = 'u8[1536]{0}', space=vmem, size = 0x800, scoped, tag = 'input window, operand 1, single buffered']
    #allocation6 [shape = 's32[1]{0}', space=sflag, size = 0x4, scoped, tag = 'scoped memory for tpu_custom_call.1']
    #allocation7 [shape = 'u8[24576]{0}', space=vmem, size = 0x6000, scoped, tag = 'output window, operand 0, single buffered']
    %7 = vsyncpa [#allocation3], 0
    %8 = vsyncpa [#allocation6], 0
    %9 = vsyncpa [#allocation4], 0
    // Predicated region
    $region2: #{tpu_custom_call.1} parent=1 // pred_check
      _
    $region3: #{tpu_custom_call.1} parent=1 // pred_check_branch
      %11 = sbr.rel (0) target = $region5
    $region4: #{tpu_custom_call.1} parent=1 // pred_region
      %13 = vsyncadd [#allocation3], 0
      %s14 = sshll.u32 %s0, 4
      %s15 = int_to_ptr.hbm [resolvable:$true] %s14
      %s16 = sshll.u32 [#allocation2], 4
      %s17 = int_to_ptr.vmem [resolvable:$true] %s16
      %22 = dma.hbm_to_vmem [thread:$0]  %s15, 768, %s17, [#allocation3], 384, 384, 24
    $region5: #{tpu_custom_call.1} parent=1 // pred_fallthru
      _
    // Predicated region
    $region6: #{tpu_custom_call.1} parent=1 // pred_check
      _
    $region7: #{tpu_custom_call.1} parent=1 // pred_check_branch
      %24 = sbr.rel (0) target = $region9
    $region8: #{tpu_custom_call.1} parent=1 // pred_region
      %26 = vsyncadd [#allocation6], 0
      %s28 = sshll.u32 %s1, 4
      %s29 = int_to_ptr.hbm [resolvable:$true] %s28
      %s30 = sshll.u32 [#allocation5], 4
      %s31 = int_to_ptr.vmem [resolvable:$true] %s30
      %33 = dma.hbm_to_vmem [thread:$0]  %s29, 48, %s31, [#allocation6]
    $region9: #{tpu_custom_call.1} parent=1 // pred_fallthru
      _
    // Predicated region
    $region10: #{tpu_custom_call.1} parent=1 // pred_check
      _
    $region11: #{tpu_custom_call.1} parent=1 // pred_check_branch
      %35 = sbr.rel (0) target = $region13
    $region12: #{tpu_custom_call.1} parent=1 // pred_region
      %37 = dma.done [#allocation3], 768
    $region13: #{tpu_custom_call.1} parent=1 // pred_fallthru
      _
    // Predicated region
    $region14: #{tpu_custom_call.1} parent=1 // pred_check
      _
    $region15: #{tpu_custom_call.1} parent=1 // pred_check_branch
      %39 = sbr.rel (0) target = $region17
    $region16: #{tpu_custom_call.1} parent=1 // pred_region
      %41 = dma.done [#allocation6], 48
    $region17: #{tpu_custom_call.1} parent=1 // pred_fallthru
      _
    %v42 = vld [vmem:[#allocation2] sm:$0xff]
    %v43 = vld [vmem:[#allocation2 + $0x8] sm:$0xff]
    %v44 = vld [vmem:[#allocation2 + $0x10] sm:$0xff]
    %v45 = vld [vmem:[#allocation2 + $0x18] sm:$0xff]
    %v46 = vld [vmem:[#allocation2 + $0x20] sm:$0xff]
    %v47 = vld [vmem:[#allocation2 + $0x28] sm:$0xff]
    %v48 = vld [vmem:[#allocation5] sm:$0x7]
    %v50 = vperm.slane %v48, 0
    %v51 = vperm.slane %v48, 1
    %v52 = vperm.slane %v48, 2
    %v56 = vmul.f32 %v42, %v50
    %v57 = vmul.f32 %v43, %v51
    %v58 = vmul.f32 %v44, %v52
    %v59 = vmul.f32 %v45, %v50
    %v60 = vmul.f32 %v46, %v51
    %v61 = vmul.f32 %v47, %v52
    %62 = vst [vmem:[#allocation7] sm:$0xff] %v56
    %63 = vst [vmem:[#allocation7 + $0x8] sm:$0xff] %v57
    %64 = vst [vmem:[#allocation7 + $0x10] sm:$0xff] %v58
    %65 = vst [vmem:[#allocation7 + $0x18] sm:$0xff] %v59
    %66 = vst [vmem:[#allocation7 + $0x20] sm:$0xff] %v60
    %67 = vst [vmem:[#allocation7 + $0x28] sm:$0xff] %v61
    // Predicated region
    $region18: #{tpu_custom_call.1} parent=1 // pred_check
      _
    $region19: #{tpu_custom_call.1} parent=1 // pred_check_branch
      %69 = sbr.rel (0) target = $region21
    $region20: #{tpu_custom_call.1} parent=1 // pred_region
      %71 = vsyncadd [#allocation4], 0
      %s72 = sshll.u32 [#allocation7], 4
      %s73 = int_to_ptr.vmem [resolvable:$true] %s72
      %s74 = sshll.u32 %s2, 4
      %s75 = int_to_ptr.hbm [resolvable:$true] %s74
      %80 = dma.vmem_to_hbm [thread:$0]  %s73, 768, %s75, [#allocation4], 384, 384, 24
    $region21: #{tpu_custom_call.1} parent=1 // pred_fallthru
      _
    // Predicated region
    $region22: #{tpu_custom_call.1} parent=1 // pred_check
      _
    $region23: #{tpu_custom_call.1} parent=1 // pred_check_branch
      %82 = sbr.rel (0) target = $region25
    $region24: #{tpu_custom_call.1} parent=1 // pred_region
      %84 = dma.done [#allocation4], 768
    $region25: #{tpu_custom_call.1} parent=1 // pred_fallthru
      _
    %85 = vsyncpa [#allocation3], 1
    %86 = vsyncpa [#allocation6], 1
    %87 = vsyncpa [#allocation4], 1

</llo_original>
